<compile_context>
chip_gen: v5e
topology: v5e:2x2
jax: 0.10.0
libtpu: 0.0.40
codegen_flags: <defaults>
</compile_context>

<pallas_src>
import math
import jax
import jax.numpy as jnp
from jax.experimental import pallas as pl
from jax.experimental.pallas import tpu as pltpu


def _round_up(x, m):
    return ((x + m - 1) // m) * m


def _tpu_generation():
    """Best-effort TPU generation from device_kind (None if unknown)."""
    try:
        kind = jax.devices()[0].device_kind.lower()
    except Exception:
        return None
    if "tpu7" in kind or "7x" in kind or "v7" in kind:
        return 7
    for g in (6, 5, 4, 3, 2):
        if f"v{g}" in kind:
            return g
    return None


# ----------------------------- Pallas kernel ------------------------------
def _make_actor_kernel(bf16_elementwise):
    """Kernel factory: bf16_elementwise=True does the bias-add + tanh in bf16
    (v6e/v7x EUP), False keeps elementwise math in f32 (v5e)."""

    def kernel(x_ref, w1_ref, b1_ref, w2_ref, b2_ref, w3_ref, b3_ref,
               wmu_ref, bmu_ref, mean_ref):
        def hidden(h, w_ref, b_ref):
            # bf16 MXU matmul, f32 accumulate + bias-add.
            z = jnp.dot(h, w_ref[...], preferred_element_type=jnp.float32) + b_ref[...]
            if bf16_elementwise:
                # bf16 tanh halves EUP pushes; output is already bf16 for the
                # next MXU matmul (no extra cast op).
                return jnp.tanh(z.astype(jnp.bfloat16))
            # f32 tanh (v5e), cast once for the next matmul.
            return jnp.tanh(z).astype(jnp.bfloat16)

        h = hidden(x_ref[...], w1_ref, b1_ref)     # x already bf16 (wrapper cast)
        h = hidden(h, w2_ref, b2_ref)
        h = hidden(h, w3_ref, b3_ref)
        # mu head: f32 bias-add + tanh for output accuracy, lane-dense
        # (TB, 128) slab; store dtype picked per-generation in the wrapper.
        mu = jnp.tanh(jnp.dot(h, wmu_ref[...],
                              preferred_element_type=jnp.float32) + bmu_ref[...])
        mean_ref[...] = mu.astype(mean_ref.dtype)

    return kernel


# ------------------------- prepared (hot-path) params ----------------------
def prepare_actor_params(params):
    """One-time prep: bf16 weight casts, lane-dense padded mu head, exp(log_std).
    Call once per parameter update, NOT per forward call."""
    act_dim = params["wmu"].shape[1]
    act_pad = _round_up(max(act_dim, 128), 128)        # lane-dense output width

    wmu = jnp.zeros((params["wmu"].shape[0], act_pad), jnp.bfloat16)
    wmu = wmu.at[:, :act_dim].set(params["wmu"].astype(jnp.bfloat16))
    bmu = jnp.zeros((1, act_pad), jnp.float32)
    bmu = bmu.at[:, :act_dim].set(params["bmu"])

    return {
        "w1": params["w1"].astype(jnp.bfloat16), "b1": params["b1"],
        "w2": params["w2"].astype(jnp.bfloat16), "b2": params["b2"],
        "w3": params["w3"].astype(jnp.bfloat16), "b3": params["b3"],
        "wmu": wmu, "bmu": bmu,
        "std": jnp.exp(params["log_std"]),             # state independent
        "act_dim": act_dim, "act_pad": act_pad,
    }


# ------------------------------- wrapper -----------------------------------
def actor_forward(x, prep, *, tb_max=2048, bf16_elementwise=None, out_dtype=None):
    """Actor forward pass.  Returns (mean, std).

      mean: (batch, act_dim) float32
      std:  (act_dim,)       float32   (state independent, as in the module)
    """
    batch, obs_dim = x.shape
    act_dim, act_pad = prep["act_dim"], prep["act_pad"]

    gen = _tpu_generation()
    if bf16_elementwise is None:
        # bf16 EUP/VPU exists on v6e / v7x (and presumably newer); not on <= v5.
        bf16_elementwise = (gen is None) or (gen >= 6)
    if out_dtype is None:
        # v5e: halve the 64x write-amplified output stream; f32 elsewhere.
        out_dtype = jnp.bfloat16 if (gen is not None and gen <= 5) else jnp.float32

    # Batch tiling: big tiles (overhead-bound otherwise), but keep >= 2 grid
    # steps for batch > 8 so v7x can shard the "parallel" axis over both TCs.
    if batch <= 8:
        TB = _round_up(max(batch, 1), 8)
    else:
        TB = max(8, min(tb_max, _round_up(pl.cdiv(batch, 2), 8)))
    padded_batch = _round_up(batch, TB)

    # bf16 input: halves x DMA, removes the in-kernel cast.
    xb = x.astype(jnp.bfloat16)
    if padded_batch != batch:
        xb = jnp.pad(xb, ((0, padded_batch - batch), (0, 0)))

    grid = (padded_batch // TB,)

    def batch_map(i):
        return (i, 0)

    def const_map(i):
        return (0, 0)

    kernel = _make_actor_kernel(bf16_elementwise)

    mean_pad = pl.pallas_call(
        kernel,
        out_shape=jax.ShapeDtypeStruct((padded_batch, act_pad), out_dtype),
        grid=grid,
        in_specs=[
            pl.BlockSpec((TB, obs_dim), batch_map),          # x tile (bf16)
            pl.BlockSpec(prep["w1"].shape, const_map),       # resident weights
            pl.BlockSpec(prep["b1"].shape, const_map),
            pl.BlockSpec(prep["w2"].shape, const_map),
            pl.BlockSpec(prep["b2"].shape, const_map),
            pl.BlockSpec(prep["w3"].shape, const_map),
            pl.BlockSpec(prep["b3"].shape, const_map),
            pl.BlockSpec(prep["wmu"].shape, const_map),
            pl.BlockSpec(prep["bmu"].shape, const_map),
        ],
        out_specs=pl.BlockSpec((TB, act_pad), batch_map),
        compiler_params=pltpu.CompilerParams(
            dimension_semantics=("parallel",),
            vmem_limit_bytes=32 * 1024 * 1024),
    )(xb, prep["w1"], prep["b1"], prep["w2"], prep["b2"],
      prep["w3"], prep["b3"], prep["wmu"], prep["bmu"])

    mean = mean_pad[:batch, :act_dim].astype(jnp.float32)
    return mean, prep["std"]


# ---------------------- deterministic parameter init ----------------------
def _orthogonal(key, in_dim, out_dim, gain):
    """Orthogonal init (nn.init.orthogonal_ equivalent), (in, out) layout."""
    init = jax.nn.initializers.orthogonal(scale=gain)
    return init(key, (in_dim, out_dim), jnp.float32)


def make_actor_params(obs_dim, act_dim, seed=0):
    keys = jax.random.split(jax.random.PRNGKey(seed), 4)
    g = math.sqrt(2.0)
    return {
        "w1": _orthogonal(keys[0], obs_dim, 256, g),
        "b1": jnp.zeros((1, 256), jnp.float32),
        "w2": _orthogonal(keys[1], 256, 256, g),
        "b2": jnp.zeros((1, 256), jnp.float32),
        "w3": _orthogonal(keys[2], 256, 128, g),
        "b3": jnp.zeros((1, 128), jnp.float32),
        "wmu": _orthogonal(keys[3], 128, act_dim, 0.01),
        "bmu": jnp.zeros((1, act_dim), jnp.float32),
        "log_std": jnp.zeros((act_dim,), jnp.float32),   # as in the module
    }


# ------------------------------ references ---------------------------------
def actor_forward_ref_f32(x, p):
    """Pure f32 reference (original module semantics)."""
    hp = jax.lax.Precision.HIGHEST
    h = jnp.tanh(jnp.dot(x, p["w1"], precision=hp) + p["b1"])
    h = jnp.tanh(jnp.dot(h, p["w2"], precision=hp) + p["b2"])
    h = jnp.tanh(jnp.dot(h, p["w3"], precision=hp) + p["b3"])
    mean = jnp.tanh(jnp.dot(h, p["wmu"], precision=hp) + p["bmu"])
    std = jnp.exp(p["log_std"])
    return mean, std


def actor_forward_ref_model(x, p, *, bf16_elementwise, out_dtype):
    """Reference mirroring the kernel arithmetic: bf16 MXU operands with f32
    accumulation, and the same per-generation elementwise/output dtypes."""
    b16 = jnp.bfloat16

    def hidden(h, w, b):
        z = jnp.dot(h.astype(b16), w.astype(b16),
                    preferred_element_type=jnp.float32) + b
        if bf16_elementwise:
            return jnp.tanh(z.astype(b16))
        return jnp.tanh(z)

    h = hidden(x, p["w1"], p["b1"])
    h = hidden(h, p["w2"], p["b2"])
    h = hidden(h, p["w3"], p["b3"])
    mu = jnp.tanh(jnp.dot(h.astype(b16), p["wmu"].astype(b16),
                          preferred_element_type=jnp.float32) + p["bmu"])
    mean = mu.astype(out_dtype).astype(jnp.float32)
    std = jnp.exp(p["log_std"])
    return mean, std


if __name__ == "__main__":
    # LunarLanderContinuous-v3: obs_dim = 8, act_dim = 2
    OBS_DIM, ACT_DIM = 8, 2

    params = make_actor_params(OBS_DIM, ACT_DIM, seed=0)
    prep = prepare_actor_params(params)

    gen = _tpu_generation()
    bf16_elt = (gen is None) or (gen >= 6)
    odt = jnp.bfloat16 if (gen is not None and gen <= 5) else jnp.float32
    tight_tol = 1e-2 if odt == jnp.bfloat16 else 2e-3

    key = jax.random.PRNGKey(0)
    # Small rollout batch (single tile) and a larger batch (padded, 2-step grid).
    for batch in (8, 300):
        key, kx = jax.random.split(key)
        x = jax.random.normal(kx, (batch, OBS_DIM), jnp.float32)

        mean, std = actor_forward(x, prep)
        jax.block_until_ready((mean, std))

        assert mean.shape == (batch, ACT_DIM)
        assert std.shape == (ACT_DIM,)

        # tight check against a reference with the same arithmetic model
        mean_m, _ = actor_forward_ref_model(
            x, params, bf16_elementwise=bf16_elt, out_dtype=odt)
        # loose sanity check against the original f32 module math
        mean_f, std_f = actor_forward_ref_f32(x, params)

        assert jnp.allclose(mean, mean_m, atol=tight_tol, rtol=tight_tol), \
            "model-ref mismatch"
        assert jnp.allclose(mean, mean_f, atol=5e-2, rtol=5e-2), "f32-ref mismatch"
        assert jnp.allclose(std, std_f, atol=1e-6, rtol=1e-6)

    print("KERNEL_OK")
</pallas_src>

<mosaic_0001>
module attributes {stable_mosaic.version = 11 : i64} {
  func.func @kernel(%arg0: i32, %arg1: memref<8x8xbf16, #tpu.memory_space<vmem>>, %arg2: memref<8x256xbf16, #tpu.memory_space<vmem>>, %arg3: memref<1x256xf32, #tpu.memory_space<vmem>>, %arg4: memref<256x256xbf16, #tpu.memory_space<vmem>>, %arg5: memref<1x256xf32, #tpu.memory_space<vmem>>, %arg6: memref<256x128xbf16, #tpu.memory_space<vmem>>, %arg7: memref<1x128xf32, #tpu.memory_space<vmem>>, %arg8: memref<128x128xbf16, #tpu.memory_space<vmem>>, %arg9: memref<1x128xf32, #tpu.memory_space<vmem>>, %arg10: memref<8x128xf32, #tpu.memory_space<vmem>>) attributes {dimension_semantics = [#tpu.dimension_semantics<parallel>], iteration_bounds = array<i64: 1>, scalar_prefetch = 0 : i64, scratch_operands = 0 : i64, tpu.core_type = #tpu.core_type<tc>, window_params = [{transform_indices = @transform_0, window_bounds = array<i64: 8, 8>}, {pipeline_mode = #tpu.pipeline_mode<synchronous>, transform_indices = @transform_1, window_bounds = array<i64: 8, 256>}, {pipeline_mode = #tpu.pipeline_mode<synchronous>, transform_indices = @transform_2, window_bounds = array<i64: 1, 256>}, {pipeline_mode = #tpu.pipeline_mode<synchronous>, transform_indices = @transform_3, window_bounds = array<i64: 256, 256>}, {pipeline_mode = #tpu.pipeline_mode<synchronous>, transform_indices = @transform_4, window_bounds = array<i64: 1, 256>}, {pipeline_mode = #tpu.pipeline_mode<synchronous>, transform_indices = @transform_5, window_bounds = array<i64: 256, 128>}, {pipeline_mode = #tpu.pipeline_mode<synchronous>, transform_indices = @transform_6, window_bounds = array<i64: 1, 128>}, {pipeline_mode = #tpu.pipeline_mode<synchronous>, transform_indices = @transform_7, window_bounds = array<i64: 128, 128>}, {pipeline_mode = #tpu.pipeline_mode<synchronous>, transform_indices = @transform_8, window_bounds = array<i64: 1, 128>}, {transform_indices = @transform_9, window_bounds = array<i64: 8, 128>}]} {
    %c0 = arith.constant 0 : index
    %c0_0 = arith.constant 0 : index
    %0 = vector.load %arg1[%c0, %c0_0] : memref<8x8xbf16, #tpu.memory_space<vmem>>, vector<8x8xbf16>
    %c0_1 = arith.constant 0 : index
    %c0_2 = arith.constant 0 : index
    %1 = vector.load %arg2[%c0_1, %c0_2] : memref<8x256xbf16, #tpu.memory_space<vmem>>, vector<8x256xbf16>
    %cst = arith.constant dense<0.000000e+00> : vector<8x256xf32>
    %2 = tpu.matmul %0, %1, %cst {dimension_numbers = #tpu.dot_dimension_numbers<[1], [0], [0], [1], [0, 0, 1, 1], [], []>} : vector<8x8xbf16>, vector<8x256xbf16>, vector<8x256xf32> -> vector<8x256xf32>
    %c0_3 = arith.constant 0 : index
    %c0_4 = arith.constant 0 : index
    %3 = vector.load %arg3[%c0_3, %c0_4] : memref<1x256xf32, #tpu.memory_space<vmem>>, vector<1x256xf32>
    %4 = vector.broadcast %3 : vector<1x256xf32> to vector<8x256xf32>
    %5 = arith.addf %2, %4 : vector<8x256xf32>
    %6 = arith.truncf %5 : vector<8x256xf32> to vector<8x256xbf16>
    %7 = math.tanh %6 : vector<8x256xbf16>
    %c0_5 = arith.constant 0 : index
    %c0_6 = arith.constant 0 : index
    %8 = vector.load %arg4[%c0_5, %c0_6] : memref<256x256xbf16, #tpu.memory_space<vmem>>, vector<256x256xbf16>
    %cst_7 = arith.constant dense<0.000000e+00> : vector<8x256xf32>
    %9 = tpu.matmul %7, %8, %cst_7 {dimension_numbers = #tpu.dot_dimension_numbers<[1], [0], [0], [1], [0, 0, 1, 1], [], []>} : vector<8x256xbf16>, vector<256x256xbf16>, vector<8x256xf32> -> vector<8x256xf32>
    %c0_8 = arith.constant 0 : index
    %c0_9 = arith.constant 0 : index
    %10 = vector.load %arg5[%c0_8, %c0_9] : memref<1x256xf32, #tpu.memory_space<vmem>>, vector<1x256xf32>
    %11 = vector.broadcast %10 : vector<1x256xf32> to vector<8x256xf32>
    %12 = arith.addf %9, %11 : vector<8x256xf32>
    %13 = arith.truncf %12 : vector<8x256xf32> to vector<8x256xbf16>
    %14 = math.tanh %13 : vector<8x256xbf16>
    %c0_10 = arith.constant 0 : index
    %c0_11 = arith.constant 0 : index
    %15 = vector.load %arg6[%c0_10, %c0_11] : memref<256x128xbf16, #tpu.memory_space<vmem>>, vector<256x128xbf16>
    %cst_12 = arith.constant dense<0.000000e+00> : vector<8x128xf32>
    %16 = tpu.matmul %14, %15, %cst_12 {dimension_numbers = #tpu.dot_dimension_numbers<[1], [0], [0], [1], [0, 0, 1, 1], [], []>} : vector<8x256xbf16>, vector<256x128xbf16>, vector<8x128xf32> -> vector<8x128xf32>
    %c0_13 = arith.constant 0 : index
    %c0_14 = arith.constant 0 : index
    %17 = vector.load %arg7[%c0_13, %c0_14] : memref<1x128xf32, #tpu.memory_space<vmem>>, vector<1x128xf32>
    %18 = vector.broadcast %17 : vector<1x128xf32> to vector<8x128xf32>
    %19 = arith.addf %16, %18 : vector<8x128xf32>
    %20 = arith.truncf %19 : vector<8x128xf32> to vector<8x128xbf16>
    %21 = math.tanh %20 : vector<8x128xbf16>
    %c0_15 = arith.constant 0 : index
    %c0_16 = arith.constant 0 : index
    %22 = vector.load %arg8[%c0_15, %c0_16] : memref<128x128xbf16, #tpu.memory_space<vmem>>, vector<128x128xbf16>
    %cst_17 = arith.constant dense<0.000000e+00> : vector<8x128xf32>
    %23 = tpu.matmul %21, %22, %cst_17 {dimension_numbers = #tpu.dot_dimension_numbers<[1], [0], [0], [1], [0, 0, 1, 1], [], []>} : vector<8x128xbf16>, vector<128x128xbf16>, vector<8x128xf32> -> vector<8x128xf32>
    %c0_18 = arith.constant 0 : index
    %c0_19 = arith.constant 0 : index
    %24 = vector.load %arg9[%c0_18, %c0_19] : memref<1x128xf32, #tpu.memory_space<vmem>>, vector<1x128xf32>
    %25 = vector.broadcast %24 : vector<1x128xf32> to vector<8x128xf32>
    %26 = arith.addf %23, %25 : vector<8x128xf32>
    %27 = math.tanh %26 : vector<8x128xf32>
    %c0_20 = arith.constant 0 : index
    %c0_21 = arith.constant 0 : index
    %28 = vector.load %arg10[%c0_20, %c0_21] : memref<8x128xf32, #tpu.memory_space<vmem>>, vector<8x128xf32>
    tpu.vector_store %arg10[%c0_20, %c0_21], %27 {strides = array<i32>} : memref<8x128xf32, #tpu.memory_space<vmem>>, vector<8x128xf32>,
    return
  }
  func.func @transform_0(%arg0: i32) -> (i32, i32) {
    %c0_i32 = arith.constant 0 : i32
    %c0_i32_0 = arith.constant 0 : i32
    return %arg0, %c0_i32 : i32, i32
  }
  func.func @transform_1(%arg0: i32) -> (i32, i32) {
    %c0_i32 = arith.constant 0 : i32
    %c0_i32_0 = arith.constant 0 : i32
    %c0_i32_1 = arith.constant 0 : i32
    return %c0_i32, %c0_i32_0 : i32, i32
  }
  func.func @transform_2(%arg0: i32) -> (i32, i32) {
    %c0_i32 = arith.constant 0 : i32
    %c0_i32_0 = arith.constant 0 : i32
    %c0_i32_1 = arith.constant 0 : i32
    return %c0_i32, %c0_i32_0 : i32, i32
  }
  func.func @transform_3(%arg0: i32) -> (i32, i32) {
    %c0_i32 = arith.constant 0 : i32
    %c0_i32_0 = arith.constant 0 : i32
    %c0_i32_1 = arith.constant 0 : i32
    return %c0_i32, %c0_i32_0 : i32, i32
  }
  func.func @transform_4(%arg0: i32) -> (i32, i32) {
    %c0_i32 = arith.constant 0 : i32
    %c0_i32_0 = arith.constant 0 : i32
    %c0_i32_1 = arith.constant 0 : i32
    return %c0_i32, %c0_i32_0 : i32, i32
  }
  func.func @transform_5(%arg0: i32) -> (i32, i32) {
    %c0_i32 = arith.constant 0 : i32
    %c0_i32_0 = arith.constant 0 : i32
    %c0_i32_1 = arith.constant 0 : i32
    return %c0_i32, %c0_i32_0 : i32, i32
  }
  func.func @transform_6(%arg0: i32) -> (i32, i32) {
    %c0_i32 = arith.constant 0 : i32
    %c0_i32_0 = arith.constant 0 : i32
    %c0_i32_1 = arith.constant 0 : i32
    return %c0_i32, %c0_i32_0 : i32, i32
  }
  func.func @transform_7(%arg0: i32) -> (i32, i32) {
    %c0_i32 = arith.constant 0 : i32
    %c0_i32_0 = arith.constant 0 : i32
    %c0_i32_1 = arith.constant 0 : i32
    return %c0_i32, %c0_i32_0 : i32, i32
  }
  func.func @transform_8(%arg0: i32) -> (i32, i32) {
    %c0_i32 = arith.constant 0 : i32
    %c0_i32_0 = arith.constant 0 : i32
    %c0_i32_1 = arith.constant 0 : i32
    return %c0_i32, %c0_i32_0 : i32, i32
  }
  func.func @transform_9(%arg0: i32) -> (i32, i32) {
    %c0_i32 = arith.constant 0 : i32
    %c0_i32_0 = arith.constant 0 : i32
    return %arg0, %c0_i32 : i32, i32
  }
}

</mosaic_0001>

<llo_original>
// kernel: tpu_custom_call.1
$region0: #{tpu_custom_call.1}
  #allocation0 [shape = 'u32[]', space=smem, size = 0x4, offset = 0x4, fixed_abs, tag = 'smem constant byte address 0x4 - core index']
  #allocation1 [shape = 'u32[72,128]{1,0:T(1,128)}', space=vmem, size = 0x9000, scoped, tag = 'internal scratch']
  %s0 = inlined_call_operand.hbm [shape: bf16[8,8], index: 0, kind: input, shape index: {}]
  %s1 = inlined_call_operand.hbm [shape: bf16[8,256], index: 1, kind: input, shape index: {}]
  %s2 = inlined_call_operand.hbm [shape: f32[1,256], index: 2, kind: input, shape index: {}]
  %s3 = inlined_call_operand.hbm [shape: bf16[256,256], index: 3, kind: input, shape index: {}]
  %s4 = inlined_call_operand.vmem [shape: f32[1,256], index: 4, kind: input, shape index: {}]
  %s5 = inlined_call_operand.hbm [shape: bf16[256,128], index: 5, kind: input, shape index: {}]
  %s6 = inlined_call_operand.vmem [shape: f32[1,128], index: 6, kind: input, shape index: {}]
  %s7 = inlined_call_operand.hbm [shape: bf16[128,128], index: 7, kind: input, shape index: {}]
  %s8 = inlined_call_operand.vmem [shape: f32[1,128], index: 8, kind: input, shape index: {}]
  %s9 = inlined_call_operand.hbm [shape: f32[8,128], index: 9, kind: output, shape index: {}]
  %s10 = sld [smem:[#allocation0]]
  $region70: #{tpu_custom_call.1} parent=0
    _
  %s12 = ssub.s32 1, %s10
  %s13 = scalar_select 0, %s12, %s10
  $region1: #{tpu_custom_call.1} parent=0
    #allocation2 [shape = 'u8[2048]{0}', space=vmem, size = 0x800, scoped, tag = 'input window, operand 0, single buffered']
    #allocation3 [shape = 's32[1]{0}', space=sflag, size = 0x4, scoped, tag = 'scoped memory for tpu_custom_call.1']
    #allocation4 [shape = 's32[1]{0}', space=sflag, size = 0x4, scoped, tag = 'scoped memory for tpu_custom_call.1']
    #allocation5 [shape = 'u8[4096]{0}', space=vmem, size = 0x1000, scoped, tag = 'input window, operand 1, single buffered']
    #allocation6 [shape = 's32[1]{0}', space=sflag, size = 0x4, scoped, tag = 'scoped memory for tpu_custom_call.1']
    #allocation7 [shape = 'u8[1024]{0}', space=vmem, size = 0x400, scoped, tag = 'input window, operand 2, single buffered']
    #allocation8 [shape = 'u8[131072]{0}', space=vmem, size = 0x20000, scoped, tag = 'input window, operand 3, single buffered']
    #allocation9 [shape = 's32[1]{0}', space=sflag, size = 0x4, scoped, tag = 'scoped memory for tpu_custom_call.1']
    #allocation10 [shape = 'u8[65536]{0}', space=vmem, size = 0x10000, scoped, tag = 'input window, operand 5, single buffered']
    #allocation11 [shape = 'u8[32768]{0}', space=vmem, size = 0x8000, scoped, tag = 'input window, operand 7, single buffered']
    #allocation12 [shape = 's32[1]{0}', space=sflag, size = 0x4, scoped, tag = 'scoped memory for tpu_custom_call.1']
    #allocation13 [shape = 'u8[4096]{0}', space=vmem, size = 0x1000, scoped, tag = 'output window, operand 0, single buffered']
    %14 = vsyncpa [#allocation3], 0
    %15 = vsyncpa [#allocation6], 0
    %16 = vsyncpa [#allocation9], 0
    %17 = vsyncpa [#allocation12], 0
    %18 = vsyncpa [#allocation4], 0
    // Predicated region
    $region2: #{tpu_custom_call.1} parent=1 // pred_check
      _
    $region3: #{tpu_custom_call.1} parent=1 // pred_check_branch
      %20 = sbr.rel (0) target = $region5
    $region4: #{tpu_custom_call.1} parent=1 // pred_region
      %22 = vsyncadd [#allocation3], 0
      %s24 = sshll.u32 %s0, 4
      %s25 = int_to_ptr.hbm [resolvable:$true] %s24
      %s26 = sshll.u32 [#allocation2], 4
      %s27 = int_to_ptr.vmem [resolvable:$true] %s26
      %29 = dma.hbm_to_vmem [thread:$0]  %s25, 64, %s27, [#allocation3]
    $region5: #{tpu_custom_call.1} parent=1 // pred_fallthru
      _
    // Predicated region
    $region6: #{tpu_custom_call.1} parent=1 // pred_check
      _
    $region7: #{tpu_custom_call.1} parent=1 // pred_check_branch
      %31 = sbr.rel (0) target = $region9
    $region8: #{tpu_custom_call.1} parent=1 // pred_region
      %33 = vsyncadd [#allocation6], 0
      %s35 = sshll.u32 %s1, 4
      %s36 = int_to_ptr.hbm [resolvable:$true] %s35
      %s37 = sshll.u32 [#allocation5], 4
      %s38 = int_to_ptr.vmem [resolvable:$true] %s37
      %40 = dma.hbm_to_vmem [thread:$0]  %s36, 128, %s38, [#allocation6]
    $region9: #{tpu_custom_call.1} parent=1 // pred_fallthru
      _
    // Predicated region
    $region10: #{tpu_custom_call.1} parent=1 // pred_check
      _
    $region11: #{tpu_custom_call.1} parent=1 // pred_check_branch
      %42 = sbr.rel (0) target = $region13
    $region12: #{tpu_custom_call.1} parent=1 // pred_region
      %44 = vsyncadd [#allocation6], 0
      %s46 = sshll.u32 %s2, 4
      %s47 = int_to_ptr.hbm [resolvable:$true] %s46
      %s48 = sshll.u32 [#allocation7], 4
      %s49 = int_to_ptr.vmem [resolvable:$true] %s48
      %51 = dma.hbm_to_vmem [thread:$0]  %s47, 32, %s49, [#allocation6]
    $region13: #{tpu_custom_call.1} parent=1 // pred_fallthru
      _
    // Predicated region
    $region14: #{tpu_custom_call.1} parent=1 // pred_check
      _
    $region15: #{tpu_custom_call.1} parent=1 // pred_check_branch
      %53 = sbr.rel (0) target = $region17
    $region16: #{tpu_custom_call.1} parent=1 // pred_region
      %55 = vsyncadd [#allocation9], 0
      %s56 = sshll.u32 %s3, 4
      %s57 = int_to_ptr.hbm [resolvable:$true] %s56
      %s58 = sshll.u32 [#allocation8], 4
      %s59 = int_to_ptr.vmem [resolvable:$true] %s58
      %64 = dma.hbm_to_vmem [thread:$0]  %s57, 4096, %s59, [#allocation9], 128, 128, 8
    $region17: #{tpu_custom_call.1} parent=1 // pred_fallthru
      _
    // Predicated region
    $region18: #{tpu_custom_call.1} parent=1 // pred_check
      _
    $region19: #{tpu_custom_call.1} parent=1 // pred_check_branch
      %66 = sbr.rel (0) target = $region21
    $region20: #{tpu_custom_call.1} parent=1 // pred_region
      _
    $region21: #{tpu_custom_call.1} parent=1 // pred_fallthru
      _
    // Predicated region
    $region22: #{tpu_custom_call.1} parent=1 // pred_check
      _
    $region23: #{tpu_custom_call.1} parent=1 // pred_check_branch
      %68 = sbr.rel (0) target = $region25
    $region24: #{tpu_custom_call.1} parent=1 // pred_region
      %70 = vsyncadd [#allocation9], 0
      %s71 = sshll.u32 %s5, 4
      %s72 = int_to_ptr.hbm [resolvable:$true] %s71
      %s73 = sshll.u32 [#allocation10], 4
      %s74 = int_to_ptr.vmem [resolvable:$true] %s73
      %79 = dma.hbm_to_vmem [thread:$0]  %s72, 2048, %s74, [#allocation9], 64, 64, 4
    $region25: #{tpu_custom_call.1} parent=1 // pred_fallthru
      _
    // Predicated region
    $region26: #{tpu_custom_call.1} parent=1 // pred_check
      _
    $region27: #{tpu_custom_call.1} parent=1 // pred_check_branch
      %81 = sbr.rel (0) target = $region29
    $region28: #{tpu_custom_call.1} parent=1 // pred_region
      _
    $region29: #{tpu_custom_call.1} parent=1 // pred_fallthru
      _
    // Predicated region
    $region30: #{tpu_custom_call.1} parent=1 // pred_check
      _
    $region31: #{tpu_custom_call.1} parent=1 // pred_check_branch
      %83 = sbr.rel (0) target = $region33
    $region32: #{tpu_custom_call.1} parent=1 // pred_region
      %85 = vsyncadd [#allocation12], 0
      %s86 = sshll.u32 %s7, 4
      %s87 = int_to_ptr.hbm [resolvable:$true] %s86
      %s88 = sshll.u32 [#allocation11], 4
      %s89 = int_to_ptr.vmem [resolvable:$true] %s88
      %94 = dma.hbm_to_vmem [thread:$0]  %s87, 1024, %s89, [#allocation12], 64, 64, 4
    $region33: #{tpu_custom_call.1} parent=1 // pred_fallthru
      _
    // Predicated region
    $region34: #{tpu_custom_call.1} parent=1 // pred_check
      _
    $region35: #{tpu_custom_call.1} parent=1 // pred_check_branch
      %96 = sbr.rel (0) target = $region37
    $region36: #{tpu_custom_call.1} parent=1 // pred_region
      _
    $region37: #{tpu_custom_call.1} parent=1 // pred_fallthru
      _
    // Predicated region
    $region38: #{tpu_custom_call.1} parent=1 // pred_check
      _
    $region39: #{tpu_custom_call.1} parent=1 // pred_check_branch
      %98 = sbr.rel (0) target = $region41
    $region40: #{tpu_custom_call.1} parent=1 // pred_region
      %100 = dma.done [#allocation3], 64
    $region41: #{tpu_custom_call.1} parent=1 // pred_fallthru
      _
    // Predicated region
    $region42: #{tpu_custom_call.1} parent=1 // pred_check
      _
    $region43: #{tpu_custom_call.1} parent=1 // pred_check_branch
      %102 = sbr.rel (0) target = $region45
    $region44: #{tpu_custom_call.1} parent=1 // pred_region
      %104 = dma.done [#allocation6], 128
    $region45: #{tpu_custom_call.1} parent=1 // pred_fallthru
      _
    // Predicated region
    $region46: #{tpu_custom_call.1} parent=1 // pred_check
      _
    $region47: #{tpu_custom_call.1} parent=1 // pred_check_branch
      %106 = sbr.rel (0) target = $region49
    $region48: #{tpu_custom_call.1} parent=1 // pred_region
      %108 = dma.done [#allocation6], 32
    $region49: #{tpu_custom_call.1} parent=1 // pred_fallthru
      _
    // Predicated region
    $region50: #{tpu_custom_call.1} parent=1 // pred_check
      _
    $region51: #{tpu_custom_call.1} parent=1 // pred_check_branch
      %110 = sbr.rel (0) target = $region53
    $region52: #{tpu_custom_call.1} parent=1 // pred_region
      %112 = dma.done [#allocation9], 4096
    $region53: #{tpu_custom_call.1} parent=1 // pred_fallthru
      _
    // Predicated region
    $region54: #{tpu_custom_call.1} parent=1 // pred_check
      _
    $region55: #{tpu_custom_call.1} parent=1 // pred_check_branch
      %114 = sbr.rel (0) target = $region57
    $region56: #{tpu_custom_call.1} parent=1 // pred_region
      %116 = dma.done [#allocation9], 2048
    $region57: #{tpu_custom_call.1} parent=1 // pred_fallthru
      _
    // Predicated region
    $region58: #{tpu_custom_call.1} parent=1 // pred_check
      _
    $region59: #{tpu_custom_call.1} parent=1 // pred_check_branch
      %118 = sbr.rel (0) target = $region61
    $region60: #{tpu_custom_call.1} parent=1 // pred_region
      %120 = dma.done [#allocation12], 1024
    $region61: #{tpu_custom_call.1} parent=1 // pred_fallthru
      _
    %v122 = vld [vmem:[#allocation2] sm:$0xf]
    %v123 = vld [vmem:[#allocation5] sm:$0xff]
    %v124 = vld [vmem:[#allocation7] sm:$0x3]
    %v126 = vperm.slane %v124, 0
    %v127 = vperm.slane %v124, 1
    %v131 = vunpack.c.l.b16 %v123
    %v132 = vunpack.c.h.b16 %v123
    %v133 = vpack.c.b16 %v131, %v131
    %v134 = vpack.c.b16 %v132, %v132
    %vm135 = vcmask 64512
    %v137 = vsel %vm135, %v122, 0
    %vm139 = vcmask 1043456
    %v141 = vsel %vm139, %v133, 0
    %v144 = vsel %vm139, %v134, 0
    %146 = vmatpush.bf16.msra.mxu0 0
    %147 = vmatpush.bf16.msra.mxu0 0
    %148 = vmatpush.bf16.msra.mxu0 0
    %149 = vmatpush.bf16.msra.mxu0 0
    %150 = vmatpush.bf16.msra.mxu0 0
    %151 = vmatpush.bf16.msra.mxu0 0
    %152 = vmatpush.bf16.msra.mxu0 0
    %153 = vmatpush.bf16.msra.mxu0 %v141
    %154 = vmatmul.bf16.gmra.mxu0 %v137
    %v155 = vpop.f32.mrf.mxu0
    %v156 = vadd.f32 %v126, %v155
    %v157 = vpop.f32.mrf.mxu0
    %158 = vdwg.mxu0
    %159 = vmatpush.bf16.msra.mxu0 0
    %160 = vmatpush.bf16.msra.mxu0 0
    %161 = vmatpush.bf16.msra.mxu0 0
    %162 = vmatpush.bf16.msra.mxu0 0
    %163 = vmatpush.bf16.msra.mxu0 0
    %164 = vmatpush.bf16.msra.mxu0 0
    %165 = vmatpush.bf16.msra.mxu0 0
    %166 = vmatpush.bf16.msra.mxu0 %v144
    %167 = vmatmul.bf16.gmra.mxu0 %v137
    %v168 = vpop.f32.mrf.mxu0
    %v169 = vadd.f32 %v127, %v168
    %v170 = vpop.f32.mrf.mxu0
    %171 = vdwg.mxu0
    %v172 = vpack.c.bf16 %v156, %v156
    %v173 = vpack.c.bf16 %v169, %v169
    %v174 = vunpack.c.l.bf16 %v172
    %v175 = vunpack.c.l.bf16 %v173
    %v176 = vtanh.pop %v174
    %v177 = vtanh.pop %v175
    %v178 = vpack.c.bf16 %v176, %v176
    %v179 = vpack.c.bf16 %v177, %v177
    %v180 = vld [vmem:[#allocation8] sm:$0xff]
    %v181 = vld [vmem:[#allocation8 + $0x8] sm:$0xff]
    %v182 = vld [vmem:[#allocation8 + $0x10] sm:$0xff]
    %v183 = vld [vmem:[#allocation8 + $0x18] sm:$0xff]
    %v184 = vld [vmem:[#allocation8 + $0x20] sm:$0xff]
    %v185 = vld [vmem:[#allocation8 + $0x28] sm:$0xff]
    %v186 = vld [vmem:[#allocation8 + $0x30] sm:$0xff]
    %v187 = vld [vmem:[#allocation8 + $0x38] sm:$0xff]
    %v188 = vld [vmem:[#allocation8 + $0x40] sm:$0xff]
    %v189 = vld [vmem:[#allocation8 + $0x48] sm:$0xff]
    %v190 = vld [vmem:[#allocation8 + $0x50] sm:$0xff]
    %v191 = vld [vmem:[#allocation8 + $0x58] sm:$0xff]
    %v192 = vld [vmem:[#allocation8 + $0x60] sm:$0xff]
    %v193 = vld [vmem:[#allocation8 + $0x68] sm:$0xff]
    %v194 = vld [vmem:[#allocation8 + $0x70] sm:$0xff]
    %v195 = vld [vmem:[#allocation8 + $0x78] sm:$0xff]
    %v196 = vld [vmem:[#allocation8 + $0x80] sm:$0xff]
    %v197 = vld [vmem:[#allocation8 + $0x88] sm:$0xff]
    %v198 = vld [vmem:[#allocation8 + $0x90] sm:$0xff]
    %v199 = vld [vmem:[#allocation8 + $0x98] sm:$0xff]
    %v200 = vld [vmem:[#allocation8 + $0xa0] sm:$0xff]
    %v201 = vld [vmem:[#allocation8 + $0xa8] sm:$0xff]
    %v202 = vld [vmem:[#allocation8 + $0xb0] sm:$0xff]
    %v203 = vld [vmem:[#allocation8 + $0xb8] sm:$0xff]
    %v204 = vld [vmem:[#allocation8 + $0xc0] sm:$0xff]
    %v205 = vld [vmem:[#allocation8 + $0xc8] sm:$0xff]
    %v206 = vld [vmem:[#allocation8 + $0xd0] sm:$0xff]
    %v207 = vld [vmem:[#allocation8 + $0xd8] sm:$0xff]
    %v208 = vld [vmem:[#allocation8 + $0xe0] sm:$0xff]
    %v209 = vld [vmem:[#allocation8 + $0xe8] sm:$0xff]
    %v210 = vld [vmem:[#allocation8 + $0xf0] sm:$0xff]
    %v211 = vld [vmem:[#allocation8 + $0xf8] sm:$0xff]
    %v212 = vld [vmem:[%s4] sm:$0x3]
    %v214 = vperm.slane %v212, 0
    %v215 = vperm.slane %v212, 1
    %v250 = vunpack.c.l.b16 %v180
    %v251 = vunpack.c.h.b16 %v180
    %v252 = vunpack.c.l.b16 %v181
    %v253 = vunpack.c.h.b16 %v181
    %v254 = vunpack.c.l.b16 %v182
    %v255 = vunpack.c.h.b16 %v182
    %v256 = vunpack.c.l.b16 %v183
    %v257 = vunpack.c.h.b16 %v183
    %v258 = vunpack.c.l.b16 %v184
    %v259 = vunpack.c.h.b16 %v184
    %v260 = vunpack.c.l.b16 %v185
    %v261 = vunpack.c.h.b16 %v185
    %v262 = vunpack.c.l.b16 %v186
    %v263 = vunpack.c.h.b16 %v186
    %v264 = vunpack.c.l.b16 %v187
    %v265 = vunpack.c.h.b16 %v187
    %v266 = vunpack.c.l.b16 %v188
    %v267 = vunpack.c.h.b16 %v188
    %v268 = vunpack.c.l.b16 %v189
    %v269 = vunpack.c.h.b16 %v189
    %v270 = vunpack.c.l.b16 %v190
    %v271 = vunpack.c.h.b16 %v190
    %v272 = vunpack.c.l.b16 %v191
    %v273 = vunpack.c.h.b16 %v191
    %v274 = vunpack.c.l.b16 %v192
    %v275 = vunpack.c.h.b16 %v192
    %v276 = vunpack.c.l.b16 %v193
    %v277 = vunpack.c.h.b16 %v193
    %v278 = vunpack.c.l.b16 %v194
    %v279 = vunpack.c.h.b16 %v194
    %v280 = vunpack.c.l.b16 %v195
    %v281 = vunpack.c.h.b16 %v195
    %v282 = vunpack.c.l.b16 %v196
    %v283 = vunpack.c.h.b16 %v196
    %v284 = vunpack.c.l.b16 %v197
    %v285 = vunpack.c.h.b16 %v197
    %v286 = vunpack.c.l.b16 %v198
    %v287 = vunpack.c.h.b16 %v198
    %v288 = vunpack.c.l.b16 %v199
    %v289 = vunpack.c.h.b16 %v199
    %v290 = vunpack.c.l.b16 %v200
    %v291 = vunpack.c.h.b16 %v200
    %v292 = vunpack.c.l.b16 %v201
    %v293 = vunpack.c.h.b16 %v201
    %v294 = vunpack.c.l.b16 %v202
    %v295 = vunpack.c.h.b16 %v202
    %v296 = vunpack.c.l.b16 %v203
    %v297 = vunpack.c.h.b16 %v203
    %v298 = vunpack.c.l.b16 %v204
    %v299 = vunpack.c.h.b16 %v204
    %v300 = vunpack.c.l.b16 %v205
    %v301 = vunpack.c.h.b16 %v205
    %v302 = vunpack.c.l.b16 %v206
    %v303 = vunpack.c.h.b16 %v206
    %v304 = vunpack.c.l.b16 %v207
    %v305 = vunpack.c.h.b16 %v207
    %v306 = vunpack.c.l.b16 %v208
    %v307 = vunpack.c.h.b16 %v208
    %v308 = vunpack.c.l.b16 %v209
    %v309 = vunpack.c.h.b16 %v209
    %v310 = vunpack.c.l.b16 %v210
    %v311 = vunpack.c.h.b16 %v210
    %v312 = vunpack.c.l.b16 %v211
    %v313 = vunpack.c.h.b16 %v211
    %v314 = vpack.c.b16 %v252, %v250
    %v315 = vpack.c.b16 %v253, %v251
    %v316 = vpack.c.b16 %v256, %v254
    %v317 = vpack.c.b16 %v257, %v255
    %v318 = vpack.c.b16 %v260, %v258
    %v319 = vpack.c.b16 %v261, %v259
    %v320 = vpack.c.b16 %v264, %v262
    %v321 = vpack.c.b16 %v265, %v263
    %v322 = vpack.c.b16 %v268, %v266
    %v323 = vpack.c.b16 %v269, %v267
    %v324 = vpack.c.b16 %v272, %v270
    %v325 = vpack.c.b16 %v273, %v271
    %v326 = vpack.c.b16 %v276, %v274
    %v327 = vpack.c.b16 %v277, %v275
    %v328 = vpack.c.b16 %v280, %v278
    %v329 = vpack.c.b16 %v281, %v279
    %v330 = vpack.c.b16 %v284, %v282
    %v331 = vpack.c.b16 %v285, %v283
    %v332 = vpack.c.b16 %v288, %v286
    %v333 = vpack.c.b16 %v289, %v287
    %v334 = vpack.c.b16 %v292, %v290
    %v335 = vpack.c.b16 %v293, %v291
    %v336 = vpack.c.b16 %v296, %v294
    %v337 = vpack.c.b16 %v297, %v295
    %v338 = vpack.c.b16 %v300, %v298
    %v339 = vpack.c.b16 %v301, %v299
    %v340 = vpack.c.b16 %v304, %v302
    %v341 = vpack.c.b16 %v305, %v303
    %v342 = vpack.c.b16 %v308, %v306
    %v343 = vpack.c.b16 %v309, %v307
    %v344 = vpack.c.b16 %v312, %v310
    %v345 = vpack.c.b16 %v313, %v311
    %378 = vmatpush.bf16.msra.mxu0 %v328
    %379 = vmatpush.bf16.msra.mxu0 %v326
    %380 = vmatpush.bf16.msra.mxu0 %v324
    %381 = vmatpush.bf16.msra.mxu0 %v322
    %382 = vmatpush.bf16.msra.mxu0 %v320
    %383 = vmatpush.bf16.msra.mxu0 %v318
    %384 = vmatpush.bf16.msra.mxu0 %v316
    %385 = vmatpush.bf16.msra.mxu0 %v314
    %386 = vmatmul.bf16.gmra.mxu0 %v178
    %v387 = vpop.f32.mrf.mxu0
    %v388 = vadd.f32 %v214, %v387
    %v389 = vpop.f32.mrf.mxu0
    %390 = vdwg.mxu0
    %391 = vmatpush.bf16.msra.mxu0 %v344
    %392 = vmatpush.bf16.msra.mxu0 %v342
    %393 = vmatpush.bf16.msra.mxu0 %v340
    %394 = vmatpush.bf16.msra.mxu0 %v338
    %395 = vmatpush.bf16.msra.mxu0 %v336
    %396 = vmatpush.bf16.msra.mxu0 %v334
    %397 = vmatpush.bf16.msra.mxu0 %v332
    %398 = vmatpush.bf16.msra.mxu0 %v330
    %399 = vmatmul.bf16.gmra.mxu0 %v179
    %v400 = vpop.f32.mrf.mxu0
    %v401 = vadd.f32 %v388, %v400
    %v402 = vpop.f32.mrf.mxu0
    %403 = vdwg.mxu0
    %404 = vmatpush.bf16.msra.mxu0 %v329
    %405 = vmatpush.bf16.msra.mxu0 %v327
    %406 = vmatpush.bf16.msra.mxu0 %v325
    %407 = vmatpush.bf16.msra.mxu0 %v323
    %408 = vmatpush.bf16.msra.mxu0 %v321
    %409 = vmatpush.bf16.msra.mxu0 %v319
    %410 = vmatpush.bf16.msra.mxu0 %v317
    %411 = vmatpush.bf16.msra.mxu0 %v315
    %412 = vmatmul.bf16.gmra.mxu0 %v178
    %v413 = vpop.f32.mrf.mxu0
    %v414 = vadd.f32 %v215, %v413
    %v415 = vpop.f32.mrf.mxu0
    %416 = vdwg.mxu0
    %417 = vmatpush.bf16.msra.mxu0 %v345
    %418 = vmatpush.bf16.msra.mxu0 %v343
    %419 = vmatpush.bf16.msra.mxu0 %v341
    %420 = vmatpush.bf16.msra.mxu0 %v339
    %421 = vmatpush.bf16.msra.mxu0 %v337
    %422 = vmatpush.bf16.msra.mxu0 %v335
    %423 = vmatpush.bf16.msra.mxu0 %v333
    %424 = vmatpush.bf16.msra.mxu0 %v331
    %425 = vmatmul.bf16.gmra.mxu0 %v179
    %v426 = vpop.f32.mrf.mxu0
    %v427 = vadd.f32 %v414, %v426
    %v428 = vpop.f32.mrf.mxu0
    %429 = vdwg.mxu0
    %v430 = vpack.c.bf16 %v401, %v401
    %v431 = vpack.c.bf16 %v427, %v427
    %v432 = vunpack.c.l.bf16 %v430
    %v433 = vunpack.c.l.bf16 %v431
    %v434 = vtanh.pop %v432
    %v435 = vtanh.pop %v433
    %v436 = vpack.c.bf16 %v434, %v434
    %v437 = vpack.c.bf16 %v435, %v435
    %v438 = vld [vmem:[#allocation10] sm:$0xf]
    %v439 = vld [vmem:[#allocation10 + $0x4] sm:$0xf]
    %v440 = vld [vmem:[#allocation10 + $0x8] sm:$0xf]
    %v441 = vld [vmem:[#allocation10 + $0xc] sm:$0xf]
    %v442 = vld [vmem:[#allocation10 + $0x10] sm:$0xf]
    %v443 = vld [vmem:[#allocation10 + $0x14] sm:$0xf]
    %v444 = vld [vmem:[#allocation10 + $0x18] sm:$0xf]
    %v445 = vld [vmem:[#allocation10 + $0x1c] sm:$0xf]
    %v446 = vld [vmem:[#allocation10 + $0x20] sm:$0xf]
    %v447 = vld [vmem:[#allocation10 + $0x24] sm:$0xf]
    %v448 = vld [vmem:[#allocation10 + $0x28] sm:$0xf]
    %v449 = vld [vmem:[#allocation10 + $0x2c] sm:$0xf]
    %v450 = vld [vmem:[#allocation10 + $0x30] sm:$0xf]
    %v451 = vld [vmem:[#allocation10 + $0x34] sm:$0xf]
    %v452 = vld [vmem:[#allocation10 + $0x38] sm:$0xf]
    %v453 = vld [vmem:[#allocation10 + $0x3c] sm:$0xf]
    %v454 = vld [vmem:[#allocation10 + $0x40] sm:$0xf]
    %v455 = vld [vmem:[#allocation10 + $0x44] sm:$0xf]
    %v456 = vld [vmem:[#allocation10 + $0x48] sm:$0xf]
    %v457 = vld [vmem:[#allocation10 + $0x4c] sm:$0xf]
    %v458 = vld [vmem:[#allocation10 + $0x50] sm:$0xf]
    %v459 = vld [vmem:[#allocation10 + $0x54] sm:$0xf]
    %v460 = vld [vmem:[#allocation10 + $0x58] sm:$0xf]
    %v461 = vld [vmem:[#allocation10 + $0x5c] sm:$0xf]
    %v462 = vld [vmem:[#allocation10 + $0x60] sm:$0xf]
    %v463 = vld [vmem:[#allocation10 + $0x64] sm:$0xf]
    %v464 = vld [vmem:[#allocation10 + $0x68] sm:$0xf]
    %v465 = vld [vmem:[#allocation10 + $0x6c] sm:$0xf]
    %v466 = vld [vmem:[#allocation10 + $0x70] sm:$0xf]
    %v467 = vld [vmem:[#allocation10 + $0x74] sm:$0xf]
    %v468 = vld [vmem:[#allocation10 + $0x78] sm:$0xf]
    %v469 = vld [vmem:[#allocation10 + $0x7c] sm:$0xf]
    %v470 = vld [vmem:[%s6] sm:$0x1]
    %v472 = vperm.slane %v470, 0
    %v506 = vunpack.c.l.b16 %v438
    %v507 = vunpack.c.l.b16 %v439
    %v508 = vunpack.c.l.b16 %v440
    %v509 = vunpack.c.l.b16 %v441
    %v510 = vunpack.c.l.b16 %v442
    %v511 = vunpack.c.l.b16 %v443
    %v512 = vunpack.c.l.b16 %v444
    %v513 = vunpack.c.l.b16 %v445
    %v514 = vunpack.c.l.b16 %v446
    %v515 = vunpack.c.l.b16 %v447
    %v516 = vunpack.c.l.b16 %v448
    %v517 = vunpack.c.l.b16 %v449
    %v518 = vunpack.c.l.b16 %v450
    %v519 = vunpack.c.l.b16 %v451
    %v520 = vunpack.c.l.b16 %v452
    %v521 = vunpack.c.l.b16 %v453
    %v522 = vunpack.c.l.b16 %v454
    %v523 = vunpack.c.l.b16 %v455
    %v524 = vunpack.c.l.b16 %v456
    %v525 = vunpack.c.l.b16 %v457
    %v526 = vunpack.c.l.b16 %v458
    %v527 = vunpack.c.l.b16 %v459
    %v528 = vunpack.c.l.b16 %v460
    %v529 = vunpack.c.l.b16 %v461
    %v530 = vunpack.c.l.b16 %v462
    %v531 = vunpack.c.l.b16 %v463
    %v532 = vunpack.c.l.b16 %v464
    %v533 = vunpack.c.l.b16 %v465
    %v534 = vunpack.c.l.b16 %v466
    %v535 = vunpack.c.l.b16 %v467
    %v536 = vunpack.c.l.b16 %v468
    %v537 = vunpack.c.l.b16 %v469
    %v538 = vpack.c.b16 %v507, %v506
    %v539 = vpack.c.b16 %v509, %v508
    %v540 = vpack.c.b16 %v511, %v510
    %v541 = vpack.c.b16 %v513, %v512
    %v542 = vpack.c.b16 %v515, %v514
    %v543 = vpack.c.b16 %v517, %v516
    %v544 = vpack.c.b16 %v519, %v518
    %v545 = vpack.c.b16 %v521, %v520
    %v546 = vpack.c.b16 %v523, %v522
    %v547 = vpack.c.b16 %v525, %v524
    %v548 = vpack.c.b16 %v527, %v526
    %v549 = vpack.c.b16 %v529, %v528
    %v550 = vpack.c.b16 %v531, %v530
    %v551 = vpack.c.b16 %v533, %v532
    %v552 = vpack.c.b16 %v535, %v534
    %v553 = vpack.c.b16 %v537, %v536
    %570 = vmatpush.bf16.msra.mxu0 %v545
    %571 = vmatpush.bf16.msra.mxu0 %v544
    %572 = vmatpush.bf16.msra.mxu0 %v543
    %573 = vmatpush.bf16.msra.mxu0 %v542
    %574 = vmatpush.bf16.msra.mxu0 %v541
    %575 = vmatpush.bf16.msra.mxu0 %v540
    %576 = vmatpush.bf16.msra.mxu0 %v539
    %577 = vmatpush.bf16.msra.mxu0 %v538
    %578 = vmatmul.bf16.gmra.mxu0 %v436
    %v579 = vpop.f32.mrf.mxu0
    %v580 = vadd.f32 %v472, %v579
    %v581 = vpop.f32.mrf.mxu0
    %582 = vdwg.mxu0
    %583 = vmatpush.bf16.msra.mxu0 %v553
    %584 = vmatpush.bf16.msra.mxu0 %v552
    %585 = vmatpush.bf16.msra.mxu0 %v551
    %586 = vmatpush.bf16.msra.mxu0 %v550
    %587 = vmatpush.bf16.msra.mxu0 %v549
    %588 = vmatpush.bf16.msra.mxu0 %v548
    %589 = vmatpush.bf16.msra.mxu0 %v547
    %590 = vmatpush.bf16.msra.mxu0 %v546
    %591 = vmatmul.bf16.gmra.mxu0 %v437
    %v592 = vpop.f32.mrf.mxu0
    %v593 = vadd.f32 %v580, %v592
    %v594 = vpop.f32.mrf.mxu0
    %595 = vdwg.mxu0
    %v596 = vpack.c.bf16 %v593, %v593
    %v597 = vunpack.c.l.bf16 %v596
    %v598 = vtanh.pop %v597
    %v599 = vpack.c.bf16 %v598, %v598
    %v600 = vld [vmem:[#allocation11] sm:$0xf]
    %v601 = vld [vmem:[#allocation11 + $0x4] sm:$0xf]
    %v602 = vld [vmem:[#allocation11 + $0x8] sm:$0xf]
    %v603 = vld [vmem:[#allocation11 + $0xc] sm:$0xf]
    %v604 = vld [vmem:[#allocation11 + $0x10] sm:$0xf]
    %v605 = vld [vmem:[#allocation11 + $0x14] sm:$0xf]
    %v606 = vld [vmem:[#allocation11 + $0x18] sm:$0xf]
    %v607 = vld [vmem:[#allocation11 + $0x1c] sm:$0xf]
    %v608 = vld [vmem:[#allocation11 + $0x20] sm:$0xf]
    %v609 = vld [vmem:[#allocation11 + $0x24] sm:$0xf]
    %v610 = vld [vmem:[#allocation11 + $0x28] sm:$0xf]
    %v611 = vld [vmem:[#allocation11 + $0x2c] sm:$0xf]
    %v612 = vld [vmem:[#allocation11 + $0x30] sm:$0xf]
    %v613 = vld [vmem:[#allocation11 + $0x34] sm:$0xf]
    %v614 = vld [vmem:[#allocation11 + $0x38] sm:$0xf]
    %v615 = vld [vmem:[#allocation11 + $0x3c] sm:$0xf]
    %v616 = vld [vmem:[%s8] sm:$0x1]
    %v618 = vperm.slane %v616, 0
    %v636 = vunpack.c.l.b16 %v600
    %v637 = vunpack.c.l.b16 %v601
    %v638 = vunpack.c.l.b16 %v602
    %v639 = vunpack.c.l.b16 %v603
    %v640 = vunpack.c.l.b16 %v604
    %v641 = vunpack.c.l.b16 %v605
    %v642 = vunpack.c.l.b16 %v606
    %v643 = vunpack.c.l.b16 %v607
    %v644 = vunpack.c.l.b16 %v608
    %v645 = vunpack.c.l.b16 %v609
    %v646 = vunpack.c.l.b16 %v610
    %v647 = vunpack.c.l.b16 %v611
    %v648 = vunpack.c.l.b16 %v612
    %v649 = vunpack.c.l.b16 %v613
    %v650 = vunpack.c.l.b16 %v614
    %v651 = vunpack.c.l.b16 %v615
    %v652 = vpack.c.b16 %v637, %v636
    %v653 = vpack.c.b16 %v639, %v638
    %v654 = vpack.c.b16 %v641, %v640
    %v655 = vpack.c.b16 %v643, %v642
    %v656 = vpack.c.b16 %v645, %v644
    %v657 = vpack.c.b16 %v647, %v646
    %v658 = vpack.c.b16 %v649, %v648
    %v659 = vpack.c.b16 %v651, %v650
    %668 = vmatpush.bf16.msra.mxu0 %v659
    %669 = vmatpush.bf16.msra.mxu0 %v658
    %670 = vmatpush.bf16.msra.mxu0 %v657
    %671 = vmatpush.bf16.msra.mxu0 %v656
    %672 = vmatpush.bf16.msra.mxu0 %v655
    %673 = vmatpush.bf16.msra.mxu0 %v654
    %674 = vmatpush.bf16.msra.mxu0 %v653
    %675 = vmatpush.bf16.msra.mxu0 %v652
    %676 = vmatmul.bf16.gmra.mxu0 %v599
    %v677 = vpop.f32.mrf.mxu0
    %v678 = vadd.f32 %v618, %v677
    %v679 = vpop.f32.mrf.mxu0
    %680 = vdwg.mxu0
    %v681 = vtanh.pop %v678
    %682 = vst [vmem:[#allocation13] sm:$0xff] %v681
    // Predicated region
    $region62: #{tpu_custom_call.1} parent=1 // pred_check
      _
    $region63: #{tpu_custom_call.1} parent=1 // pred_check_branch
      %684 = sbr.rel (0) target = $region65
    $region64: #{tpu_custom_call.1} parent=1 // pred_region
      %686 = vsyncadd [#allocation4], 0
      %s688 = sshll.u32 [#allocation13], 4
      %s689 = int_to_ptr.vmem [resolvable:$true] %s688
      %s690 = sshll.u32 %s9, 4
      %s691 = int_to_ptr.hbm [resolvable:$true] %s690
      %693 = dma.vmem_to_hbm [thread:$0]  %s689, 128, %s691, [#allocation4]
    $region65: #{tpu_custom_call.1} parent=1 // pred_fallthru
      _
    // Predicated region
    $region66: #{tpu_custom_call.1} parent=1 // pred_check
      _
    $region67: #{tpu_custom_call.1} parent=1 // pred_check_branch
      %695 = sbr.rel (0) target = $region69
    $region68: #{tpu_custom_call.1} parent=1 // pred_region
      %697 = dma.done [#allocation4], 128
    $region69: #{tpu_custom_call.1} parent=1 // pred_fallthru
      _
    %698 = vsyncpa [#allocation3], 1
    %699 = vsyncpa [#allocation6], 1
    %700 = vsyncpa [#allocation9], 1
    %701 = vsyncpa [#allocation12], 1
    %702 = vsyncpa [#allocation4], 1

</llo_original>
